<compile_context>
chip_gen: v5e
topology: v5e:2x2
jax: 0.10.0
libtpu: 0.0.40
codegen_flags: <defaults>
</compile_context>

<pallas_src>
import functools

import jax
import jax.numpy as jnp
from jax.experimental import pallas as pl
from jax.experimental.pallas import tpu as pltpu


_NEG_BIG = -1e30  # bias for padded vocab columns -> softmax prob exactly 0


def _round_up(x, m):
    return ((x + m - 1) // m) * m


# ---------------------------------------------------------------------------
# Generation-aware VMEM budget (cached once).
# ---------------------------------------------------------------------------
_VMEM_BUDGET = None


def _vmem_budget_bytes():
    global _VMEM_BUDGET
    if _VMEM_BUDGET is None:
        budget = 48 * 1024 * 1024  # conservative fallback: safe on v7x (64 MiB/TC)
        try:
            info_fn = getattr(pltpu, "get_tpu_info", None)
            if info_fn is not None:
                cap = getattr(info_fn(), "vmem_capacity_bytes", None)
                if cap:
                    budget = int(cap) * 3 // 4  # ~75% of physical VMEM per core
        except Exception:
            pass
        _VMEM_BUDGET = budget
    return _VMEM_BUDGET


# ---------------------------------------------------------------------------
# Resident (constant-index) BlockSpecs: single-buffered via pl.Buffered(1).
# Falls back gracefully if this jax version has no pipeline_mode kwarg.
# ---------------------------------------------------------------------------
def _make_resident_spec_factory():
    buffered = getattr(pl, "Buffered", None)
    if buffered is not None:
        try:
            pl.BlockSpec((8, 128), lambda i: (0, 0),
                         pipeline_mode=buffered(buffer_count=1))  # probe

            def factory(shape):
                return pl.BlockSpec(shape, lambda i: (0, 0),
                                    pipeline_mode=buffered(buffer_count=1))
            return factory, True
        except TypeError:
            pass

    def factory(shape):
        return pl.BlockSpec(shape, lambda i: (0, 0))
    return factory, False


_resident_spec, _SINGLE_BUFFERED_WEIGHTS = _make_resident_spec_factory()


# ---------------------------------------------------------------------------
# Tile-size model.
# ---------------------------------------------------------------------------
def _pick_tm(M, D, Vp):
    """Largest MXU-aligned M-tile that fits the VMEM budget with >=2 grid steps."""
    budget = _vmem_budget_bytes()

    weight_bufs = 1 if _SINGLE_BUFFERED_WEIGHTS else 2
    resident = weight_bufs * (2 * D * Vp * 2       # W1^T + W2^T, bf16
                              + (Vp + D) * 4)      # biases, f32
    per_row = (2 * D * 4          # x tile, double-buffered f32
               + 2 * D * 4        # y tile, double-buffered f32
               + 2 * Vp * 4       # logits tile, double-buffered f32
               + 14 * Vp          # logits / exp / probs f32 temps + probs bf16
               + 8 * D)           # bf16 x cast + f32 y temp
    headroom = 6 * 1024 * 1024    # compiler-internal scratch below vmem_limit

    avail = budget - resident - headroom
    if avail <= 0:
        # TODO(synk): weights do not fit resident (large V on v7x 64 MiB/TC);
        # switch to a V-axis grid with online-softmax accumulation, streaming
        # W1/W2 column blocks instead of holding both weights in VMEM.
        avail = max(per_row * 8, budget // 4)

    tm = int(avail // per_row)

    if M < 16:
        return M, budget  # tiny problem: one full-extent block (always legal)

    # Guarantee >= 2 grid steps so both v7x TensorCores get work.
    half = _round_up(-(-M // 2), 8)
    tm = min(tm, half, 2048)

    # MXU alignment: 256 on v6e/v7x (v5e only needs 128); fall back to 8.
    if tm >= 256:
        tm = (tm // 256) * 256
    else:
        tm = max(8, (tm // 8) * 8)
    return tm, budget


# ---------------------------------------------------------------------------
# Kernel.
# ---------------------------------------------------------------------------
def _interctc_kernel(x_ref, w1_ref, b1_ref, w2_ref, b2_ref, y_ref, logits_ref):
    x = x_ref[...]                                   # (TM, D) f32
    xb = x.astype(jnp.bfloat16)

    # proj_1: logits = x @ W1^T + b1  (W1^T padded to (D, Vp), bf16, resident)
    logits = jnp.dot(xb, w1_ref[...], preferred_element_type=jnp.float32) + b1_ref[...]

    # Numerically stable softmax over the (padded) vocab axis; padded columns
    # carry a -1e30 bias so exp() underflows to exactly 0 there.
    m = jnp.max(logits, axis=-1, keepdims=True)
    e = jnp.exp(logits - m)
    denom = jnp.sum(e, axis=-1, keepdims=True)
    probs = e * pl.reciprocal(denom, approx=True)

    # proj_2 + residual: y = x + probs @ W2^T + b2  (W2^T padded to (Vp, D), bf16)
    y = x + jnp.dot(probs.astype(jnp.bfloat16), w2_ref[...],
                    preferred_element_type=jnp.float32) + b2_ref[...]

    y_ref[...] = y.astype(y_ref.dtype)
    logits_ref[...] = logits.astype(logits_ref.dtype)


# ---------------------------------------------------------------------------
# Parameter prep (one-time, not per forward call).
# ---------------------------------------------------------------------------
def prepare_params(w1, b1, w2, b2):
    """Transpose PyTorch-Linear layouts into matmul layout, pad the vocab axis
    to a multiple of 128, cast weights to bf16.  D is left unpadded (full-extent
    blocks are legal), so x and y need no HBM pad/depad copies."""
    V, D = w1.shape                      # proj_1.weight: (vocab, dim_model)
    Vp = _round_up(V, 128)

    w1_t = jnp.zeros((D, Vp), jnp.bfloat16).at[:, :V].set(
        jnp.asarray(w1, jnp.float32).T.astype(jnp.bfloat16))
    w2_t = jnp.zeros((Vp, D), jnp.bfloat16).at[:V, :].set(
        jnp.asarray(w2, jnp.float32).T.astype(jnp.bfloat16))
    b1_p = jnp.full((1, Vp), _NEG_BIG, jnp.float32).at[0, :V].set(
        jnp.asarray(b1, jnp.float32))
    b2_p = jnp.asarray(b2, jnp.float32).reshape(1, D)
    return (w1_t, b1_p, w2_t, b2_p), (D, V, Vp)


# ---------------------------------------------------------------------------
# Forward wrapper.
# ---------------------------------------------------------------------------
@functools.partial(jax.jit, static_argnames=("dims",))
def interctc_residual(x, params, dims):
    """x: (B, T, D) f32.  params/dims from prepare_params.  Returns (y, logits)."""
    D, V, Vp = dims
    w1_t, b1_p, w2_t, b2_p = params
    B, T, _ = x.shape
    M = B * T

    x2d = x.reshape(M, D)                 # no HBM pad of activations

    TM, vmem_limit = _pick_tm(M, D, Vp)
    grid = (pl.cdiv(M, TM),)

    row_spec = lambda shape: pl.BlockSpec(shape, lambda i: (i, 0))

    # TODO(synk): emit logits as bfloat16 (and accept bf16 x / emit bf16 y) if
    # the downstream CTC loss tolerates it — halves the dominant HBM traffic on
    # mem-bound v6e.  Kept f32 here for exact-parity checking.
    y2d, logits2d = pl.pallas_call(
        _interctc_kernel,
        out_shape=(
            jax.ShapeDtypeStruct((M, D), jnp.float32),
            jax.ShapeDtypeStruct((M, Vp), jnp.float32),
        ),
        grid=grid,
        in_specs=[
            row_spec((TM, D)),          # x tile (pipelined)
            _resident_spec((D, Vp)),    # W1^T bf16, VMEM resident, single-buffered
            _resident_spec((1, Vp)),    # b1 (padded cols = -1e30)
            _resident_spec((Vp, D)),    # W2^T bf16, VMEM resident, single-buffered
            _resident_spec((1, D)),     # b2
        ],
        out_specs=(row_spec((TM, D)), row_spec((TM, Vp))),
        compiler_params=pltpu.CompilerParams(
            dimension_semantics=("parallel",),
            vmem_limit_bytes=vmem_limit,
        ),
    )(x2d, w1_t, b1_p, w2_t, b2_p)

    y = y2d.reshape(B, T, D)
    # Depad logits only when the vocab is not already a 128-multiple.
    logits2d = logits2d if Vp == V else logits2d[:, :V]
    logits = logits2d.reshape(B, T, V)
    return y, logits


# ---------------------------------------------------------------------------
# Deterministic init mimicking torch.nn.Linear (uniform +/- 1/sqrt(fan_in)).
# ---------------------------------------------------------------------------
def init_params(key, dim_model, vocab_size):
    k1, k2, k3, k4 = jax.random.split(key, 4)
    bound1 = 1.0 / jnp.sqrt(dim_model)     # proj_1: fan_in = dim_model
    bound2 = 1.0 / jnp.sqrt(vocab_size)    # proj_2: fan_in = vocab_size
    w1 = jax.random.uniform(k1, (vocab_size, dim_model), jnp.float32, -bound1, bound1)
    b1 = jax.random.uniform(k2, (vocab_size,), jnp.float32, -bound1, bound1)
    w2 = jax.random.uniform(k3, (dim_model, vocab_size), jnp.float32, -bound2, bound2)
    b2 = jax.random.uniform(k4, (dim_model,), jnp.float32, -bound2, bound2)
    return w1, b1, w2, b2


def _reference(x, w1, b1, w2, b2):
    logits = jnp.einsum("btd,vd->btv", x, w1) + b1
    probs = jax.nn.softmax(logits, axis=-1)
    y = x + jnp.einsum("btv,dv->btd", probs, w2) + b2
    return y, logits


if __name__ == "__main__":
    B, T, D, V = 2, 8, 32, 16
    key = jax.random.PRNGKey(0)
    kx, kp = jax.random.split(key)
    x = jax.random.normal(kx, (B, T, D), jnp.float32)
    w1, b1, w2, b2 = init_params(kp, D, V)

    params, dims = prepare_params(w1, b1, w2, b2)
    y, logits = interctc_residual(x, params, dims)
    jax.block_until_ready((y, logits))

    y_ref, logits_ref = _reference(x, w1, b1, w2, b2)
    # bf16 MXU inputs + approx reciprocal -> relax tolerance vs exact f32 reference.
    assert jnp.allclose(logits, logits_ref, atol=3e-2, rtol=3e-2), "logits mismatch"
    assert jnp.allclose(y, y_ref, atol=3e-2, rtol=3e-2), "y mismatch"

    print("KERNEL_OK")
</pallas_src>

<mosaic_0001>
module attributes {stable_mosaic.version = 11 : i64} {
  func.func @_interctc_kernel(%arg0: i32, %arg1: memref<8x32xf32, #tpu.memory_space<vmem>>, %arg2: memref<32x128xbf16, #tpu.memory_space<vmem>>, %arg3: memref<1x128xf32, #tpu.memory_space<vmem>>, %arg4: memref<128x32xbf16, #tpu.memory_space<vmem>>, %arg5: memref<1x32xf32, #tpu.memory_space<vmem>>, %arg6: memref<8x32xf32, #tpu.memory_space<vmem>>, %arg7: memref<8x128xf32, #tpu.memory_space<vmem>>) attributes {dimension_semantics = [#tpu.dimension_semantics<parallel>], iteration_bounds = array<i64: 2>, scalar_prefetch = 0 : i64, scratch_operands = 0 : i64, tpu.core_type = #tpu.core_type<tc>, window_params = [{transform_indices = @transform_0, window_bounds = array<i64: 8, 32>}, {pipeline_mode = #tpu.pipeline_mode<synchronous>, transform_indices = @transform_1, window_bounds = array<i64: 32, 128>}, {pipeline_mode = #tpu.pipeline_mode<synchronous>, transform_indices = @transform_2, window_bounds = array<i64: 1, 128>}, {pipeline_mode = #tpu.pipeline_mode<synchronous>, transform_indices = @transform_3, window_bounds = array<i64: 128, 32>}, {pipeline_mode = #tpu.pipeline_mode<synchronous>, transform_indices = @transform_4, window_bounds = array<i64: 1, 32>}, {transform_indices = @transform_5, window_bounds = array<i64: 8, 32>}, {transform_indices = @transform_6, window_bounds = array<i64: 8, 128>}]} {
    %c0 = arith.constant 0 : index
    %c0_0 = arith.constant 0 : index
    %0 = vector.load %arg1[%c0, %c0_0] : memref<8x32xf32, #tpu.memory_space<vmem>>, vector<8x32xf32>
    %1 = arith.truncf %0 : vector<8x32xf32> to vector<8x32xbf16>
    %c0_1 = arith.constant 0 : index
    %c0_2 = arith.constant 0 : index
    %2 = vector.load %arg2[%c0_1, %c0_2] : memref<32x128xbf16, #tpu.memory_space<vmem>>, vector<32x128xbf16>
    %cst = arith.constant dense<0.000000e+00> : vector<8x128xf32>
    %3 = tpu.matmul %1, %2, %cst {dimension_numbers = #tpu.dot_dimension_numbers<[1], [0], [0], [1], [0, 0, 1, 1], [], []>} : vector<8x32xbf16>, vector<32x128xbf16>, vector<8x128xf32> -> vector<8x128xf32>
    %c0_3 = arith.constant 0 : index
    %c0_4 = arith.constant 0 : index
    %4 = vector.load %arg3[%c0_3, %c0_4] : memref<1x128xf32, #tpu.memory_space<vmem>>, vector<1x128xf32>
    %5 = vector.broadcast %4 : vector<1x128xf32> to vector<8x128xf32>
    %6 = arith.addf %3, %5 : vector<8x128xf32>
    %cst_5 = arith.constant dense<0xFF800000> : vector<8xf32>
    %7 = vector.multi_reduction <maximumf>, %6, %cst_5 [1] : vector<8x128xf32> to vector<8xf32>
    %8 = vector.shape_cast %7 : vector<8xf32> to vector<8x1xf32>
    %9 = vector.broadcast %8 : vector<8x1xf32> to vector<8x128xf32>
    %10 = arith.subf %6, %9 : vector<8x128xf32>
    %11 = math.exp %10 : vector<8x128xf32>
    %cst_6 = arith.constant dense<0.000000e+00> : vector<8xf32>
    %12 = vector.multi_reduction <add>, %11, %cst_6 [1] : vector<8x128xf32> to vector<8xf32>
    %13 = vector.shape_cast %12 : vector<8xf32> to vector<8x1xf32>
    %14 = tpu.reciprocal %13 {approx = true} : vector<8x1xf32> -> vector<8x1xf32>
    %15 = vector.broadcast %14 : vector<8x1xf32> to vector<8x128xf32>
    %16 = arith.mulf %11, %15 : vector<8x128xf32>
    %17 = arith.truncf %16 : vector<8x128xf32> to vector<8x128xbf16>
    %c0_7 = arith.constant 0 : index
    %c0_8 = arith.constant 0 : index
    %18 = vector.load %arg4[%c0_7, %c0_8] : memref<128x32xbf16, #tpu.memory_space<vmem>>, vector<128x32xbf16>
    %cst_9 = arith.constant dense<0.000000e+00> : vector<8x32xf32>
    %19 = tpu.matmul %17, %18, %cst_9 {dimension_numbers = #tpu.dot_dimension_numbers<[1], [0], [0], [1], [0, 0, 1, 1], [], []>} : vector<8x128xbf16>, vector<128x32xbf16>, vector<8x32xf32> -> vector<8x32xf32>
    %20 = arith.addf %0, %19 : vector<8x32xf32>
    %c0_10 = arith.constant 0 : index
    %c0_11 = arith.constant 0 : index
    %21 = vector.load %arg5[%c0_10, %c0_11] : memref<1x32xf32, #tpu.memory_space<vmem>>, vector<1x32xf32>
    %22 = vector.broadcast %21 : vector<1x32xf32> to vector<8x32xf32>
    %23 = arith.addf %20, %22 : vector<8x32xf32>
    %c0_12 = arith.constant 0 : index
    %c0_13 = arith.constant 0 : index
    %24 = vector.load %arg6[%c0_12, %c0_13] : memref<8x32xf32, #tpu.memory_space<vmem>>, vector<8x32xf32>
    tpu.vector_store %arg6[%c0_12, %c0_13], %23 {strides = array<i32>} : memref<8x32xf32, #tpu.memory_space<vmem>>, vector<8x32xf32>,
    %c0_14 = arith.constant 0 : index
    %c0_15 = arith.constant 0 : index
    %25 = vector.load %arg7[%c0_14, %c0_15] : memref<8x128xf32, #tpu.memory_space<vmem>>, vector<8x128xf32>
    tpu.vector_store %arg7[%c0_14, %c0_15], %6 {strides = array<i32>} : memref<8x128xf32, #tpu.memory_space<vmem>>, vector<8x128xf32>,
    return
  }
  func.func @transform_0(%arg0: i32) -> (i32, i32) {
    %c0_i32 = arith.constant 0 : i32
    %c0_i32_0 = arith.constant 0 : i32
    return %arg0, %c0_i32 : i32, i32
  }
  func.func @transform_1(%arg0: i32) -> (i32, i32) {
    %c0_i32 = arith.constant 0 : i32
    %c0_i32_0 = arith.constant 0 : i32
    %c0_i32_1 = arith.constant 0 : i32
    return %c0_i32, %c0_i32_0 : i32, i32
  }
  func.func @transform_2(%arg0: i32) -> (i32, i32) {
    %c0_i32 = arith.constant 0 : i32
    %c0_i32_0 = arith.constant 0 : i32
    %c0_i32_1 = arith.constant 0 : i32
    return %c0_i32, %c0_i32_0 : i32, i32
  }
  func.func @transform_3(%arg0: i32) -> (i32, i32) {
    %c0_i32 = arith.constant 0 : i32
    %c0_i32_0 = arith.constant 0 : i32
    %c0_i32_1 = arith.constant 0 : i32
    return %c0_i32, %c0_i32_0 : i32, i32
  }
  func.func @transform_4(%arg0: i32) -> (i32, i32) {
    %c0_i32 = arith.constant 0 : i32
    %c0_i32_0 = arith.constant 0 : i32
    %c0_i32_1 = arith.constant 0 : i32
    return %c0_i32, %c0_i32_0 : i32, i32
  }
  func.func @transform_5(%arg0: i32) -> (i32, i32) {
    %c0_i32 = arith.constant 0 : i32
    %c0_i32_0 = arith.constant 0 : i32
    return %arg0, %c0_i32 : i32, i32
  }
  func.func @transform_6(%arg0: i32) -> (i32, i32) {
    %c0_i32 = arith.constant 0 : i32
    %c0_i32_0 = arith.constant 0 : i32
    return %arg0, %c0_i32 : i32, i32
  }
}

</mosaic_0001>

<llo_original>
// kernel: interctc_residual.1
$region0: #{interctc_residual.1}
  #allocation0 [shape = 'u32[]', space=smem, size = 0x4, offset = 0x4, fixed_abs, tag = 'smem constant byte address 0x4 - core index']
  #allocation1 [shape = 'u32[72,128]{1,0:T(1,128)}', space=vmem, size = 0x9000, scoped, tag = 'internal scratch']
  %s0 = inlined_call_operand.vmem [shape: f32[16,32], index: 0, kind: input, shape index: {}]
  %s1 = inlined_call_operand.vmem [shape: bf16[32,128], index: 1, kind: input, shape index: {}]
  %s2 = inlined_call_operand.vmem [shape: f32[1,128], index: 2, kind: input, shape index: {}]
  %s3 = inlined_call_operand.vmem [shape: bf16[128,32], index: 3, kind: input, shape index: {}]
  %s4 = inlined_call_operand.vmem [shape: f32[1,32], index: 4, kind: input, shape index: {}]
  %s5 = inlined_call_operand.hbm [shape: f32[16,32], index: 5, kind: output, shape index: {0}]
  %s6 = inlined_call_operand.vmem [shape: f32[16,128], index: 6, kind: output, shape index: {1}]
  %7 = xla_tuple %s5, %s6
  %s8 = sld [smem:[#allocation0]]
  $region61: #{interctc_residual.1} parent=0
    _
  %s10 = ssub.s32 1, %s8
  %s11 = scalar_select 0, %s10, %s8
  $region1: #{interctc_residual.1} parent=0
    #allocation2 [shape = 'u8[8192]{0}', space=vmem, size = 0x2000, scoped, tag = 'output window, operand 0']
    #allocation3 [shape = 's32[2]{0}', space=sflag, size = 0x8, scoped, tag = 'scoped memory for interctc_residual.1']
    %12 = vsyncpa [#allocation3], 0
    %s13 = scalar_lea.sflag [#allocation3], 1
    %14 = vsyncpa %s13, 0
    loop: start=0, step=1, limit=4
    $region2: #{interctc_residual.1} parent=1 // loop_pre_header
      _
    $region3: #{interctc_residual.1} parent=1 // loop_header
      %s16 = sphi 0, %s20
      %p17 = scmp.ge.s32.totalorder %s16, 4
      %s26 = sphi 0, %s28
      %s29 = sphi 0, %s26
      %s30 = sphi 0, %s29
      %s46 = sphi 0, %s30
      %s50 = sphi 0, %s50
      %s52 = sphi 0, %s50
      %s53 = sphi 0, %s52
      %s67 = sphi 0, %s53
      %s71 = sphi 0, %s71
      %s73 = sphi 0, %s71
      %s74 = sphi 0, %s73
      %s88 = sphi 0, %s74
      %s92 = sphi 0, %s92
      %s94 = sphi 0, %s92
      %s95 = sphi 0, %s94
      %s109 = sphi 0, %s95
      %s113 = sphi 0, %s113
      %s115 = sphi 0, %s113
      %s116 = sphi 0, %s115
      %s130 = sphi 0, %s116
      %s136 = sphi 0, %s138
      %s139 = sphi 0, %s136
      %s140 = sphi 0, %s139
      %s156 = sphi 0, %s140
      %s162 = sphi 0, %s164
      %s165 = sphi 0, %s162
      %s166 = sphi 0, %s165
      %s182 = sphi 0, %s166
    $region4: #{interctc_residual.1} parent=1 // loop_header_branch
      %19 = sbr.rel (%p17) target = $region8
    $region5: #{interctc_residual.1} parent=1 // loop_body
      %s21 = ssub.s32 %s16, 1
      %s22 = ssub.s32 %s16, 2
      %s23 = sadd.s32 %s16, 1
      %s24 = ssub.s32 %s16, %s23
      %p25 = scmp.eq.s32.totalorder %s24, 0
      %s27 = sadd.s32 %s26, 1
      %s28 = scalar_select %p25, %s26, %s27
      %p31 = pneg %p25
      %p32 = scmp.eq.s32.totalorder %s16, 1
      %p33 = por %p31, %p32
      %p34 = scmp.ne.s32.totalorder %s26, %s29
      %p35 = scmp.eq.s32.totalorder %s16, 0
      %p36 = por %p34, %p35
      %p37 = scmp.ne.s32.totalorder %s26, %s29
      %p38 = scmp.eq.s32.totalorder %s21, 1
      %p39 = por %p37, %p38
      %p40 = scmp.ne.s32.totalorder %s29, %s30
      %p41 = scmp.eq.s32.totalorder %s21, 0
      %p42 = por %p40, %p41
      %p43 = scmp.ne.s32.totalorder %s29, %s30
      %p44 = scmp.eq.s32.totalorder %s22, 1
      %p45 = por %p43, %p44
      %p47 = scmp.ne.s32.totalorder %s30, %s46
      %p48 = scmp.eq.s32.totalorder %s22, 0
      %p49 = por %p47, %p48
      %s51 = sadd.s32 %s50, 1
      %p54 = scmp.eq.s32.totalorder %s16, 1
      %p55 = scmp.ne.s32.totalorder %s50, %s52
      %p56 = scmp.eq.s32.totalorder %s16, 0
      %p57 = por %p55, %p56
      %p58 = scmp.ne.s32.totalorder %s50, %s52
      %p59 = scmp.eq.s32.totalorder %s21, 1
      %p60 = por %p58, %p59
      %p61 = scmp.ne.s32.totalorder %s52, %s53
      %p62 = scmp.eq.s32.totalorder %s21, 0
      %p63 = por %p61, %p62
      %p64 = scmp.ne.s32.totalorder %s52, %s53
      %p65 = scmp.eq.s32.totalorder %s22, 1
      %p66 = por %p64, %p65
      %p68 = scmp.ne.s32.totalorder %s53, %s67
      %p69 = scmp.eq.s32.totalorder %s22, 0
      %p70 = por %p68, %p69
      %s72 = sadd.s32 %s71, 1
      %p75 = scmp.eq.s32.totalorder %s16, 1
      %p76 = scmp.ne.s32.totalorder %s71, %s73
      %p77 = scmp.eq.s32.totalorder %s16, 0
      %p78 = por %p76, %p77
      %p79 = scmp.ne.s32.totalorder %s71, %s73
      %p80 = scmp.eq.s32.totalorder %s21, 1
      %p81 = por %p79, %p80
      %p82 = scmp.ne.s32.totalorder %s73, %s74
      %p83 = scmp.eq.s32.totalorder %s21, 0
      %p84 = por %p82, %p83
      %p85 = scmp.ne.s32.totalorder %s73, %s74
      %p86 = scmp.eq.s32.totalorder %s22, 1
      %p87 = por %p85, %p86
      %p89 = scmp.ne.s32.totalorder %s74, %s88
      %p90 = scmp.eq.s32.totalorder %s22, 0
      %p91 = por %p89, %p90
      %s93 = sadd.s32 %s92, 1
      %p96 = scmp.eq.s32.totalorder %s16, 1
      %p97 = scmp.ne.s32.totalorder %s92, %s94
      %p98 = scmp.eq.s32.totalorder %s16, 0
      %p99 = por %p97, %p98
      %p100 = scmp.ne.s32.totalorder %s92, %s94
      %p101 = scmp.eq.s32.totalorder %s21, 1
      %p102 = por %p100, %p101
      %p103 = scmp.ne.s32.totalorder %s94, %s95
      %p104 = scmp.eq.s32.totalorder %s21, 0
      %p105 = por %p103, %p104
      %p106 = scmp.ne.s32.totalorder %s94, %s95
      %p107 = scmp.eq.s32.totalorder %s22, 1
      %p108 = por %p106, %p107
      %p110 = scmp.ne.s32.totalorder %s95, %s109
      %p111 = scmp.eq.s32.totalorder %s22, 0
      %p112 = por %p110, %p111
      %s114 = sadd.s32 %s113, 1
      %p117 = scmp.eq.s32.totalorder %s16, 1
      %p118 = scmp.ne.s32.totalorder %s113, %s115
      %p119 = scmp.eq.s32.totalorder %s16, 0
      %p120 = por %p118, %p119
      %p121 = scmp.ne.s32.totalorder %s113, %s115
      %p122 = scmp.eq.s32.totalorder %s21, 1
      %p123 = por %p121, %p122
      %p124 = scmp.ne.s32.totalorder %s115, %s116
      %p125 = scmp.eq.s32.totalorder %s21, 0
      %p126 = por %p124, %p125
      %p127 = scmp.ne.s32.totalorder %s115, %s116
      %p128 = scmp.eq.s32.totalorder %s22, 1
      %p129 = por %p127, %p128
      %p131 = scmp.ne.s32.totalorder %s116, %s130
      %p132 = scmp.eq.s32.totalorder %s22, 0
      %p133 = por %p131, %p132
      %s134 = ssub.s32 %s16, %s23
      %p135 = scmp.eq.s32.totalorder %s134, 0
      %s137 = sadd.s32 %s136, 1
      %s138 = scalar_select %p135, %s136, %s137
      %p141 = pneg %p135
      %p142 = scmp.eq.s32.totalorder %s16, 1
      %p143 = por %p141, %p142
      %p144 = scmp.ne.s32.totalorder %s136, %s139
      %p145 = scmp.eq.s32.totalorder %s16, 0
      %p146 = por %p144, %p145
      %p147 = scmp.ne.s32.totalorder %s136, %s139
      %p148 = scmp.eq.s32.totalorder %s21, 1
      %p149 = por %p147, %p148
      %p150 = scmp.ne.s32.totalorder %s139, %s140
      %p151 = scmp.eq.s32.totalorder %s21, 0
      %p152 = por %p150, %p151
      %p153 = scmp.ne.s32.totalorder %s139, %s140
      %p154 = scmp.eq.s32.totalorder %s22, 1
      %p155 = por %p153, %p154
      %p157 = scmp.ne.s32.totalorder %s140, %s156
      %p158 = scmp.eq.s32.totalorder %s22, 0
      %p159 = por %p157, %p158
      %s160 = ssub.s32 %s16, %s23
      %p161 = scmp.eq.s32.totalorder %s160, 0
      %s163 = sadd.s32 %s162, 1
      %s164 = scalar_select %p161, %s162, %s163
      %p167 = pneg %p161
      %p168 = scmp.eq.s32.totalorder %s16, 1
      %p169 = por %p167, %p168
      %p170 = scmp.ne.s32.totalorder %s162, %s165
      %p171 = scmp.eq.s32.totalorder %s16, 0
      %p172 = por %p170, %p171
      %p173 = scmp.ne.s32.totalorder %s162, %s165
      %p174 = scmp.eq.s32.totalorder %s21, 1
      %p175 = por %p173, %p174
      %p176 = scmp.ne.s32.totalorder %s165, %s166
      %p177 = scmp.eq.s32.totalorder %s21, 0
      %p178 = por %p176, %p177
      %p179 = scmp.ne.s32.totalorder %s165, %s166
      %p180 = scmp.eq.s32.totalorder %s22, 1
      %p181 = por %p179, %p180
      %p183 = scmp.ne.s32.totalorder %s166, %s182
      %p184 = scmp.eq.s32.totalorder %s22, 0
      %p185 = por %p183, %p184
      %p186 = scmp.le.s32.totalorder 1, %s16
      %p187 = scmp.lt.s32.totalorder %s16, 3
      %p188 = pnand %p186, %p187
      %p189 = pneg %p188
      // Predicated region
      $region9: #{interctc_residual.1} parent=5 // pred_check
        _
      $region10: #{interctc_residual.1} parent=5 // pred_check_branch
        %191 = sbr.rel (%p188) target = $region12
      $region11: #{interctc_residual.1} parent=5 // pred_region
        %s192 = ssub.s32 %s16, 1
        // Predicated region
        $region13: #{interctc_residual.1} parent=11 // pred_check
          %p193 = pneg %p63
        $region14: #{interctc_residual.1} parent=11 // pred_check_branch
          %195 = sbr.rel (%p193) target = $region16
        $region15: #{interctc_residual.1} parent=11 // pred_region
          _
        $region16: #{interctc_residual.1} parent=11 // pred_fallthru
          _
        // Predicated region
        $region17: #{interctc_residual.1} parent=11 // pred_check
          %p196 = pneg %p84
        $region18: #{interctc_residual.1} parent=11 // pred_check_branch
          %198 = sbr.rel (%p196) target = $region20
        $region19: #{interctc_residual.1} parent=11 // pred_region
          _
        $region20: #{interctc_residual.1} parent=11 // pred_fallthru
          _
        // Predicated region
        $region21: #{interctc_residual.1} parent=11 // pred_check
          %p199 = pneg %p105
        $region22: #{interctc_residual.1} parent=11 // pred_check_branch
          %201 = sbr.rel (%p199) target = $region24
        $region23: #{interctc_residual.1} parent=11 // pred_region
          _
        $region24: #{interctc_residual.1} parent=11 // pred_fallthru
          _
        // Predicated region
        $region25: #{interctc_residual.1} parent=11 // pred_check
          %p202 = pneg %p126
        $region26: #{interctc_residual.1} parent=11 // pred_check_branch
          %204 = sbr.rel (%p202) target = $region28
        $region27: #{interctc_residual.1} parent=11 // pred_region
          _
        $region28: #{interctc_residual.1} parent=11 // pred_fallthru
          _
      $region12: #{interctc_residual.1} parent=5 // pred_fallthru
        _
      %p205 = scmp.lt.s32.totalorder %s16, 2
      // Predicated region
      $region29: #{interctc_residual.1} parent=5 // pred_check
        %p206 = pneg %p205
      $region30: #{interctc_residual.1} parent=5 // pred_check_branch
        %208 = sbr.rel (%p206) target = $region32
      $region31: #{interctc_residual.1} parent=5 // pred_region
        // Predicated region
        $region33: #{interctc_residual.1} parent=31 // pred_check
          %p209 = pneg %p36
        $region34: #{interctc_residual.1} parent=31 // pred_check_branch
          %211 = sbr.rel (%p209) target = $region36
        $region35: #{interctc_residual.1} parent=31 // pred_region
          %p212 = scmp.lt.s32.totalorder %s16, 1
          %s213 = scalar_select %p212, %s16, 1
          %s214 = smul.addr %s213, 8
          %s215 = scalar_lea.vmem %s0, %s214
        $region36: #{interctc_residual.1} parent=31 // pred_fallthru
          _
      $region32: #{interctc_residual.1} parent=5 // pred_fallthru
        _
      %p216 = scmp.le.s32.totalorder 1, %s16
      %p217 = scmp.lt.s32.totalorder %s16, 3
      %p218 = pnand %p216, %p217
      %p219 = pneg %p218
      // Predicated region
      $region37: #{interctc_residual.1} parent=5 // pred_check
        _
      $region38: #{interctc_residual.1} parent=5 // pred_check_branch
        %221 = sbr.rel (%p218) target = $region40
      $region39: #{interctc_residual.1} parent=5 // pred_region
        %s222 = ssub.s32 %s16, 1
        %p223 = scmp.lt.s32.totalorder %s21, 1
        %s224 = scalar_select %p223, %s21, 1
        %s225 = smul.addr %s224, 8
        %s226 = scalar_lea.vmem %s0, %s225
        %p227 = pneg %p42
        %p228 = pneg %p39
        %p229 = pneg %p63
        %p230 = pneg %p60
        %p231 = pneg %p84
        %p232 = pneg %p81
        %p233 = pneg %p105
        %p234 = pneg %p102
        %p235 = pneg %p126
        %p236 = pneg %p123
        %p237 = pneg %p152
        %p238 = pneg %p149
        %s239 = sand.u32 %s139, 1
        %s240 = scalar_lea.sflag [#allocation3], %s239
        %s241 = sand.u32 %s139, 1
        %s242 = smul.addr %s241, 8
        %s243 = scalar_lea.vmem [#allocation2], %s242
        %p244 = pneg %p178
        %p245 = pneg %p175
        %p246 = scmp.lt.s32.totalorder %s21, 1
        %s247 = scalar_select %p246, %s21, 1
        %s248 = smul.addr %s247, 8
        %s249 = scalar_lea.vmem %s6, %s248
        %p250 = scmp.lt.s32.totalorder %s21, 1
        %s251 = scalar_select %p250, %s21, 1
        %s252 = smul.addr %s251, 8
        %s253 = scalar_lea.vmem %s0, %s252
        %p254 = scmp.lt.s32.totalorder %s21, 1
        %s255 = scalar_select %p254, %s21, 1
        %s256 = smul.addr %s255, 8
        %s257 = scalar_lea.vmem %s6, %s256
        %v259 = vld [vmem:[%s253] sm:$0xff]
        %v260 = vpack.c.bf16 %v259, %v259
        %v261 = vld [vmem:[%s1] sm:$0xf]
        %v262 = vld [vmem:[%s1 + $0x4] sm:$0xf]
        %v263 = vld [vmem:[%s1 + $0x8] sm:$0xf]
        %v264 = vld [vmem:[%s1 + $0xc] sm:$0xf]
        %v265 = vld [vmem:[%s2] sm:$0x1]
        %v267 = vperm.slane %v265, 0
        %v273 = vunpack.c.l.b16 %v261
        %v274 = vunpack.c.l.b16 %v262
        %v275 = vunpack.c.l.b16 %v263
        %v276 = vunpack.c.l.b16 %v264
        %v277 = vpack.c.b16 %v274, %v273
        %v278 = vpack.c.b16 %v276, %v275
        %vm281 = vcmask 261120
        %v283 = vsel %vm281, %v260, 0
        %285 = vmatpush.bf16.msra.mxu0 0
        %286 = vmatpush.bf16.msra.mxu0 0
        %287 = vmatpush.bf16.msra.mxu0 0
        %288 = vmatpush.bf16.msra.mxu0 0
        %289 = vmatpush.bf16.msra.mxu0 0
        %290 = vmatpush.bf16.msra.mxu0 0
        %291 = vmatpush.bf16.msra.mxu0 %v278
        %292 = vmatpush.bf16.msra.mxu0 %v277
        %293 = vmatmul.bf16.gmra.mxu0 %v283
        %v294 = vpop.f32.mrf.mxu0
        %v295 = vadd.f32 %v267, %v294
        %v296 = vpop.f32.mrf.mxu0
        %297 = vdwg.mxu0
        %298 = vmax.xlane.f32.xlu0 %v295
        %v299 = vpop.xlane.xlu0 %298
        %v300 = vsub.f32 %v295, %v299
        %v301 = vmul.f32 %v300, 1.442695
        %v302 = vpow.pop %v301
        %303 = vadd.xlane.f32.xlu0 %v302
        %v304 = vpop.xlane.xlu0 %303
        %v305 = vrcp.pop %v304
        %v306 = vmul.f32 %v302, %v305
        %v307 = vpack.c.bf16 %v306, %v306
        %v308 = vld [vmem:[%s3] sm:$0xf]
        %v309 = vld [vmem:[%s3 + $0x4] sm:$0xf]
        %v310 = vld [vmem:[%s3 + $0x8] sm:$0xf]
        %v311 = vld [vmem:[%s3 + $0xc] sm:$0xf]
        %v312 = vld [vmem:[%s3 + $0x10] sm:$0xf]
        %v313 = vld [vmem:[%s3 + $0x14] sm:$0xf]
        %v314 = vld [vmem:[%s3 + $0x18] sm:$0xf]
        %v315 = vld [vmem:[%s3 + $0x1c] sm:$0xf]
        %v316 = vld [vmem:[%s3 + $0x20] sm:$0xf]
        %v317 = vld [vmem:[%s3 + $0x24] sm:$0xf]
        %v318 = vld [vmem:[%s3 + $0x28] sm:$0xf]
        %v319 = vld [vmem:[%s3 + $0x2c] sm:$0xf]
        %v320 = vld [vmem:[%s3 + $0x30] sm:$0xf]
        %v321 = vld [vmem:[%s3 + $0x34] sm:$0xf]
        %v322 = vld [vmem:[%s3 + $0x38] sm:$0xf]
        %v323 = vld [vmem:[%s3 + $0x3c] sm:$0xf]
        %v340 = vunpack.c.l.b16 %v308
        %v341 = vunpack.c.l.b16 %v309
        %v342 = vunpack.c.l.b16 %v310
        %v343 = vunpack.c.l.b16 %v311
        %v344 = vunpack.c.l.b16 %v312
        %v345 = vunpack.c.l.b16 %v313
        %v346 = vunpack.c.l.b16 %v314
        %v347 = vunpack.c.l.b16 %v315
        %v348 = vunpack.c.l.b16 %v316
        %v349 = vunpack.c.l.b16 %v317
        %v350 = vunpack.c.l.b16 %v318
        %v351 = vunpack.c.l.b16 %v319
        %v352 = vunpack.c.l.b16 %v320
        %v353 = vunpack.c.l.b16 %v321
        %v354 = vunpack.c.l.b16 %v322
        %v355 = vunpack.c.l.b16 %v323
        %v356 = vpack.c.b16 %v341, %v340
        %v357 = vpack.c.b16 %v343, %v342
        %v358 = vpack.c.b16 %v345, %v344
        %v359 = vpack.c.b16 %v347, %v346
        %v360 = vpack.c.b16 %v349, %v348
        %v361 = vpack.c.b16 %v351, %v350
        %v362 = vpack.c.b16 %v353, %v352
        %v363 = vpack.c.b16 %v355, %v354
        %372 = vmatpush.bf16.msra.mxu0 %v363
        %373 = vmatpush.bf16.msra.mxu0 %v362
        %374 = vmatpush.bf16.msra.mxu0 %v361
        %375 = vmatpush.bf16.msra.mxu0 %v360
        %376 = vmatpush.bf16.msra.mxu0 %v359
        %377 = vmatpush.bf16.msra.mxu0 %v358
        %378 = vmatpush.bf16.msra.mxu0 %v357
        %379 = vmatpush.bf16.msra.mxu0 %v356
        %380 = vmatmul.bf16.gmra.mxu0 %v307
        %v381 = vpop.f32.mrf.mxu0
        %v382 = vadd.f32 0.0, %v381
        %v383 = vpop.f32.mrf.mxu0
        %384 = vdwg.mxu0
        %v385 = vadd.f32 %v259, %v382
        %v386 = vld [vmem:[%s4] sm:$0x1]
        %v388 = vperm.slane %v386, 0
        %v390 = vadd.f32 %v385, %v388
        %391 = vst.msk [vmem:[%s243] sm:$0xff] %vm281, %v390
        %392 = vst [vmem:[%s257] sm:$0xff] %v295
        %s393 = sand.u32 %s139, 1
        %s394 = scalar_lea.sflag [#allocation3], %s393
        %s395 = sand.u32 %s139, 1
        %s396 = smul.addr %s395, 8
        %s397 = scalar_lea.vmem [#allocation2], %s396
        %p398 = scmp.lt.s32.totalorder %s21, 1
        %s399 = scalar_select %p398, %s21, 1
        %s400 = smul.addr %s399, 8
        %s401 = scalar_lea.vmem %s6, %s400
        // Predicated region
        $region41: #{interctc_residual.1} parent=39 // pred_check
          %p402 = pneg %p149
        $region42: #{interctc_residual.1} parent=39 // pred_check_branch
          %404 = sbr.rel (%p402) target = $region44
        $region43: #{interctc_residual.1} parent=39 // pred_region
          %406 = vsyncadd %s394, 0
          %s407 = smul.addr %s21, 8
          %s408 = scalar_lea.hbm %s5, %s407
          %s410 = sshll.u32 %s397, 4
          %s411 = int_to_ptr.vmem [resolvable:$true] %s410
          %s412 = sshll.u32 %s408, 4
          %s413 = int_to_ptr.hbm [resolvable:$true] %s412
          %415 = dma.vmem_to_hbm [thread:$0]  %s411, 128, %s413, %s394
        $region44: #{interctc_residual.1} parent=39 // pred_fallthru
          _
        // Predicated region
        $region45: #{interctc_residual.1} parent=39 // pred_check
          %p416 = pneg %p175
        $region46: #{interctc_residual.1} parent=39 // pred_check_branch
          %418 = sbr.rel (%p416) target = $region48
        $region47: #{interctc_residual.1} parent=39 // pred_region
          _
        $region48: #{interctc_residual.1} parent=39 // pred_fallthru
          _
      $region40: #{interctc_residual.1} parent=5 // pred_fallthru
        _
      %p419 = scmp.le.s32.totalorder 2, %s16
      // Predicated region
      $region49: #{interctc_residual.1} parent=5 // pred_check
        %p420 = pneg %p419
      $region50: #{interctc_residual.1} parent=5 // pred_check_branch
        %422 = sbr.rel (%p420) target = $region52
      $region51: #{interctc_residual.1} parent=5 // pred_region
        %s423 = ssub.s32 %s16, 2
        // Predicated region
        $region53: #{interctc_residual.1} parent=51 // pred_check
          %p424 = pneg %p155
        $region54: #{interctc_residual.1} parent=51 // pred_check_branch
          %426 = sbr.rel (%p424) target = $region56
        $region55: #{interctc_residual.1} parent=51 // pred_region
          %s427 = sand.u32 %s140, 1
          %s428 = scalar_lea.sflag [#allocation3], %s427
          %s429 = sand.u32 %s140, 1
          %s430 = smul.addr %s429, 8
          %s431 = scalar_lea.vmem [#allocation2], %s430
          %433 = dma.done %s428, 128
        $region56: #{interctc_residual.1} parent=51 // pred_fallthru
          _
        // Predicated region
        $region57: #{interctc_residual.1} parent=51 // pred_check
          %p434 = pneg %p181
        $region58: #{interctc_residual.1} parent=51 // pred_check_branch
          %436 = sbr.rel (%p434) target = $region60
        $region59: #{interctc_residual.1} parent=51 // pred_region
          %p437 = scmp.lt.s32.totalorder %s22, 1
          %s438 = scalar_select %p437, %s22, 1
          %s439 = smul.addr %s438, 8
          %s440 = scalar_lea.vmem %s6, %s439
        $region60: #{interctc_residual.1} parent=51 // pred_fallthru
          _
      $region52: #{interctc_residual.1} parent=5 // pred_fallthru
        _
    $region6: #{interctc_residual.1} parent=1 // loop_footer
      %s20 = sadd.s32 1, %s16
    $region7: #{interctc_residual.1} parent=1 // loop_footer_branch
      %15 = sbr.rel target = $region3
    $region8: #{interctc_residual.1} parent=1 // loop_exit
      _
    %441 = vsyncpa [#allocation3], 1
    %s442 = scalar_lea.sflag [#allocation3], 1
    %443 = vsyncpa %s442, 1

</llo_original>
